<compile_context>
chip_gen: v5e
topology: v5e:2x2
jax: 0.10.0
libtpu: 0.0.40
codegen_flags: <defaults>
</compile_context>

<pallas_src>
import functools

import jax
import jax.numpy as jnp
from jax import lax
from jax.experimental import pallas as pl
from jax.experimental.pallas import tpu as pltpu


# ----------------------------------------------------------------------------
# Kernel A: change_channels (1x1 conv, no bias) at LOW resolution.
# ----------------------------------------------------------------------------
def _lowres_1x1_kernel(x_ref, w1_ref, y_ref):
    # x_ref: (1, Cin, HW)   w1_ref: (Cout, Cin)   y_ref: (1, Cout, HW)
    y_ref[0] = jnp.dot(w1_ref[...], x_ref[0], preferred_element_type=jnp.float32)


# ----------------------------------------------------------------------------
# Kernel B (fused): skip add + depthwise 3x3 ('same') + pointwise 1x1 + ReLU,
# plus per-batch-item BatchNorm partial sums.  Everything is lane-dense:
# spatial dims are flattened to H2*W2 on the lane axis and the 3x3 halo is
# built with pltpu.roll + boundary masks (no padded HBM copy).
# ----------------------------------------------------------------------------
def _depwise_block_kernel(y_ref, x1_ref, mask_ref, wd_ref, bd_ref, w2_ref,
                          b2_ref, z_ref, sum_ref, sq_ref, *, H2, W2):
    HW2 = H2 * W2
    y = y_ref[0] + x1_ref[0]                       # skip add, (C, HW2)

    # depthwise 3x3: center tap needs no shift and no mask
    acc = wd_ref[:, 4:5] * y
    for di in range(3):
        for dj in range(3):
            if di == 1 and dj == 1:
                continue
            k = 3 * di + dj
            off = (di - 1) * W2 + (dj - 1)
            # shifted[:, p] = y[:, p + off]  (rolls land on the XLU slot)
            shifted = pltpu.roll(y, (-off) % HW2, 1)
            acc = acc + wd_ref[:, k:k + 1] * (shifted * mask_ref[k:k + 1, :])
    acc = acc + bd_ref[...]                        # depthwise bias

    # pointwise 1x1 conv + bias + ReLU
    z = jnp.dot(w2_ref[...], acc, preferred_element_type=jnp.float32)
    z = jnp.maximum(z + b2_ref[...], 0.0)
    z_ref[0] = z

    # per-batch-item BN statistics (reduced over N in tiny host glue)
    sum_ref[0] = jnp.sum(z, axis=1, keepdims=True)
    sq_ref[0] = jnp.sum(z * z, axis=1, keepdims=True)


# ----------------------------------------------------------------------------
# Kernel C: BatchNorm2d affine apply (in place on z via input_output_aliases).
# ----------------------------------------------------------------------------
def _bn_apply_kernel(z_ref, scale_ref, shift_ref, o_ref):
    o_ref[0] = z_ref[0] * scale_ref[...] + shift_ref[...]


# ----------------------------------------------------------------------------
# Wrapper
# ----------------------------------------------------------------------------
def up_block_forward(x, x1, params):
    N, Cin, H, W = x.shape
    Cout = params['w1'].shape[0]
    H2, W2 = 2 * H, 2 * W
    HW, HW2 = H * W, H2 * W2
    f32 = jnp.float32

    x_flat = x.reshape(N, Cin, HW).astype(f32)
    x1_flat = x1.reshape(N, Cout, HW2).astype(f32)

    # ---- kernel A: 1x1 conv (no bias) at LOW resolution ----
    y_low = pl.pallas_call(
        _lowres_1x1_kernel,
        out_shape=jax.ShapeDtypeStruct((N, Cout, HW), f32),
        grid=(N,),
        in_specs=[pl.BlockSpec((1, Cin, HW), lambda n: (n, 0, 0)),
                  pl.BlockSpec((Cout, Cin), lambda n: (0, 0))],
        out_specs=pl.BlockSpec((1, Cout, HW), lambda n: (n, 0, 0)),
        compiler_params=pltpu.CompilerParams(dimension_semantics=("parallel",)),
    )(x_flat, params['w1'])

    # nearest-2x upsample of the (4x smaller) conv output; stays flat/lane-dense.
    # TODO(synk): fold this replication into kernel B (needs an in-kernel lane
    # interleave) so y never round-trips HBM at full resolution.
    y_up = jnp.broadcast_to(
        y_low.reshape(N, Cout, H, 1, W, 1), (N, Cout, H, 2, W, 2)
    ).reshape(N, Cout, HW2)

    # boundary masks for the 9 depthwise taps in flat row-major layout
    rows = jnp.arange(H2).reshape(H2, 1)
    cols = jnp.arange(W2).reshape(1, W2)
    mask_list = []
    for di in range(3):
        for dj in range(3):
            oi, oj = di - 1, dj - 1
            m = ((rows + oi >= 0) & (rows + oi < H2) &
                 (cols + oj >= 0) & (cols + oj < W2))
            mask_list.append(m.astype(f32).reshape(HW2))
    masks = jnp.stack(mask_list)                   # (9, HW2)

    wd9 = params['wd'].reshape(Cout, 9)

    # ---- kernel B: fused skip add + depthwise + pointwise + ReLU + BN stats ----
    # TODO(synk): at production sizes add a spatial tiling axis (multiples of
    # (8,128) with halo) so the per-step block fits v7x's 64 MiB VMEM.
    kernel_b = functools.partial(_depwise_block_kernel, H2=H2, W2=W2)
    z, psum, psq = pl.pallas_call(
        kernel_b,
        out_shape=(jax.ShapeDtypeStruct((N, Cout, HW2), f32),
                   jax.ShapeDtypeStruct((N, Cout, 1), f32),
                   jax.ShapeDtypeStruct((N, Cout, 1), f32)),
        grid=(N,),
        in_specs=[pl.BlockSpec((1, Cout, HW2), lambda n: (n, 0, 0)),
                  pl.BlockSpec((1, Cout, HW2), lambda n: (n, 0, 0)),
                  pl.BlockSpec((9, HW2), lambda n: (0, 0)),
                  pl.BlockSpec((Cout, 9), lambda n: (0, 0)),
                  pl.BlockSpec((Cout, 1), lambda n: (0, 0)),
                  pl.BlockSpec((Cout, Cout), lambda n: (0, 0)),
                  pl.BlockSpec((Cout, 1), lambda n: (0, 0))],
        out_specs=(pl.BlockSpec((1, Cout, HW2), lambda n: (n, 0, 0)),
                   pl.BlockSpec((1, Cout, 1), lambda n: (n, 0, 0)),
                   pl.BlockSpec((1, Cout, 1), lambda n: (n, 0, 0))),
        compiler_params=pltpu.CompilerParams(
            dimension_semantics=("parallel",),
            vmem_limit_bytes=64 * 1024 * 1024),
    )(y_up, x1_flat, masks, wd9, params['bd'], params['w2'], params['b2'])

    # BatchNorm2d batch statistics (training mode, biased variance) — tiny glue.
    count = float(N * HW2)
    mean = jnp.sum(psum, axis=0) / count            # (Cout, 1)
    var = jnp.sum(psq, axis=0) / count - mean * mean
    inv_std = 1.0 / jnp.sqrt(var + 1e-5)
    scale = params['gamma'] * inv_std
    shift = params['beta'] - mean * scale

    # ---- kernel C: BN affine apply, in place on z ----
    out = pl.pallas_call(
        _bn_apply_kernel,
        out_shape=jax.ShapeDtypeStruct((N, Cout, HW2), f32),
        grid=(N,),
        in_specs=[pl.BlockSpec((1, Cout, HW2), lambda n: (n, 0, 0)),
                  pl.BlockSpec((Cout, 1), lambda n: (0, 0)),
                  pl.BlockSpec((Cout, 1), lambda n: (0, 0))],
        out_specs=pl.BlockSpec((1, Cout, HW2), lambda n: (n, 0, 0)),
        input_output_aliases={0: 0},
        compiler_params=pltpu.CompilerParams(dimension_semantics=("parallel",)),
    )(z, scale, shift)

    return out.reshape(N, Cout, H2, W2)


# ----------------------------------------------------------------------------
# Deterministic parameter init (shapes from Up_Block.__init__ with
# type_block='depwsie', last=False).
# ----------------------------------------------------------------------------
def init_params(key, in_channels, out_channels):
    ks = jax.random.split(key, 5)
    p = {}
    # change_channels: Conv2d(in, out, 1, bias=False)
    p['w1'] = 0.1 * jax.random.normal(ks[0], (out_channels, in_channels), jnp.float32)
    # Depwise_Block: depthwise Conv2d(out, out, 3, groups=out) weight (out,3,3) + bias
    p['wd'] = 0.1 * jax.random.normal(ks[1], (out_channels, 3, 3), jnp.float32)
    p['bd'] = 0.1 * jax.random.normal(ks[2], (out_channels, 1), jnp.float32)
    # pointwise Conv2d(out, out, 1) weight + bias
    p['w2'] = 0.1 * jax.random.normal(ks[3], (out_channels, out_channels), jnp.float32)
    p['b2'] = 0.1 * jax.random.normal(ks[4], (out_channels, 1), jnp.float32)
    # BatchNorm2d affine params (PyTorch init: weight=1, bias=0)
    p['gamma'] = jnp.ones((out_channels, 1), jnp.float32)
    p['beta'] = jnp.zeros((out_channels, 1), jnp.float32)
    return p


# Pure-JAX reference (correctness sanity check against the kernels).
def ref_forward(x, x1, p):
    Cout = p['w1'].shape[0]
    dn = ('NCHW', 'OIHW', 'NCHW')
    xu = jnp.repeat(jnp.repeat(x, 2, axis=2), 2, axis=3)
    y = lax.conv_general_dilated(xu, p['w1'][:, :, None, None], (1, 1), 'VALID',
                                 dimension_numbers=dn) + x1
    dw = lax.conv_general_dilated(y, p['wd'][:, None, :, :], (1, 1), 'SAME',
                                  feature_group_count=Cout, dimension_numbers=dn)
    dw = dw + p['bd'][:, 0][None, :, None, None]
    pw = lax.conv_general_dilated(dw, p['w2'][:, :, None, None], (1, 1), 'VALID',
                                  dimension_numbers=dn)
    pw = pw + p['b2'][:, 0][None, :, None, None]
    r = jnp.maximum(pw, 0.0)
    mean = r.mean(axis=(0, 2, 3), keepdims=True)
    var = ((r - mean) ** 2).mean(axis=(0, 2, 3), keepdims=True)
    g = p['gamma'][:, 0][None, :, None, None]
    b = p['beta'][:, 0][None, :, None, None]
    return (r - mean) / jnp.sqrt(var + 1e-5) * g + b


if __name__ == "__main__":
    key = jax.random.PRNGKey(0)
    k1, k2, k3 = jax.random.split(key, 3)

    in_channels, out_channels = 8, 4
    N, H, W = 2, 8, 8                       # x1 is at 2x resolution: (2,4,16,16)

    x = jax.random.normal(k1, (N, in_channels, H, W), jnp.float32)
    x1 = jax.random.normal(k2, (N, out_channels, 2 * H, 2 * W), jnp.float32)
    params = init_params(k3, in_channels, out_channels)

    out = up_block_forward(x, x1, params)
    out = jax.block_until_ready(out)

    ref = ref_forward(x, x1, params)
    assert out.shape == ref.shape == (N, out_channels, 2 * H, 2 * W)
    err = float(jnp.max(jnp.abs(out - ref)))
    if err > 5e-3:
        raise AssertionError(f"Pallas kernel mismatch vs reference, max abs err={err}")

    print("KERNEL_OK")
</pallas_src>

<mosaic_0001>
module attributes {stable_mosaic.version = 11 : i64} {
  func.func @_lowres_1x1_kernel(%arg0: i32, %arg1: memref<1x8x64xf32, #tpu.memory_space<vmem>>, %arg2: memref<4x8xf32, #tpu.memory_space<vmem>>, %arg3: memref<1x4x64xf32, #tpu.memory_space<vmem>>) attributes {dimension_semantics = [#tpu.dimension_semantics<parallel>], iteration_bounds = array<i64: 2>, scalar_prefetch = 0 : i64, scratch_operands = 0 : i64, tpu.core_type = #tpu.core_type<tc>, window_params = [{transform_indices = @transform_0, window_bounds = array<i64: 1, 8, 64>}, {pipeline_mode = #tpu.pipeline_mode<synchronous>, transform_indices = @transform_1, window_bounds = array<i64: 4, 8>}, {transform_indices = @transform_2, window_bounds = array<i64: 1, 4, 64>}]} {
    %c0 = arith.constant 0 : index
    %c0_0 = arith.constant 0 : index
    %0 = vector.load %arg2[%c0, %c0_0] : memref<4x8xf32, #tpu.memory_space<vmem>>, vector<4x8xf32>
    %c0_1 = arith.constant 0 : index
    %c0_2 = arith.constant 0 : index
    %c0_3 = arith.constant 0 : index
    %1 = vector.load %arg1[%c0_1, %c0_2, %c0_3] : memref<1x8x64xf32, #tpu.memory_space<vmem>>, vector<1x8x64xf32>
    %2 = vector.shape_cast %1 : vector<1x8x64xf32> to vector<8x64xf32>
    %cst = arith.constant dense<0.000000e+00> : vector<4x64xf32>
    %3 = tpu.matmul %0, %2, %cst {dimension_numbers = #tpu.dot_dimension_numbers<[1], [0], [0], [1], [0, 0, 1, 1], [], []>} : vector<4x8xf32>, vector<8x64xf32>, vector<4x64xf32> -> vector<4x64xf32>
    %c0_4 = arith.constant 0 : index
    %c0_5 = arith.constant 0 : index
    %c0_6 = arith.constant 0 : index
    %4 = vector.load %arg3[%c0_4, %c0_5, %c0_6] : memref<1x4x64xf32, #tpu.memory_space<vmem>>, vector<1x4x64xf32>
    %5 = vector.shape_cast %4 : vector<1x4x64xf32> to vector<4x64xf32>
    %6 = vector.shape_cast %3 : vector<4x64xf32> to vector<1x4x64xf32>
    tpu.vector_store %arg3[%c0_4, %c0_5, %c0_6], %6 {strides = array<i32>} : memref<1x4x64xf32, #tpu.memory_space<vmem>>, vector<1x4x64xf32>,
    return
  }
  func.func @transform_0(%arg0: i32) -> (i32, i32, i32) {
    %c0_i32 = arith.constant 0 : i32
    %c0_i32_0 = arith.constant 0 : i32
    %c0_i32_1 = arith.constant 0 : i32
    return %arg0, %c0_i32, %c0_i32_0 : i32, i32, i32
  }
  func.func @transform_1(%arg0: i32) -> (i32, i32) {
    %c0_i32 = arith.constant 0 : i32
    %c0_i32_0 = arith.constant 0 : i32
    %c0_i32_1 = arith.constant 0 : i32
    return %c0_i32, %c0_i32_0 : i32, i32
  }
  func.func @transform_2(%arg0: i32) -> (i32, i32, i32) {
    %c0_i32 = arith.constant 0 : i32
    %c0_i32_0 = arith.constant 0 : i32
    %c0_i32_1 = arith.constant 0 : i32
    return %arg0, %c0_i32, %c0_i32_0 : i32, i32, i32
  }
}

</mosaic_0001>

<llo_original>
// kernel: tpu_custom_call.1
$region0: #{tpu_custom_call.1}
  #allocation0 [shape = 'u32[]', space=smem, size = 0x4, offset = 0x4, fixed_abs, tag = 'smem constant byte address 0x4 - core index']
  #allocation1 [shape = 'u32[72,128]{1,0:T(1,128)}', space=vmem, size = 0x9000, scoped, tag = 'internal scratch']
  %s0 = inlined_call_operand.hbm [shape: f32[2,8,64], index: 0, kind: input, shape index: {}]
  %s1 = inlined_call_operand.hbm [shape: f32[4,8], index: 1, kind: input, shape index: {}]
  %s2 = inlined_call_operand.hbm [shape: f32[2,4,64], index: 2, kind: output, shape index: {}]
  %s3 = sld [smem:[#allocation0]]
  $region49: #{tpu_custom_call.1} parent=0
    _
  %s5 = ssub.s32 1, %s3
  %s6 = scalar_select 0, %s5, %s3
  $region1: #{tpu_custom_call.1} parent=0
    #allocation2 [shape = 'u8[8192]{0}', space=vmem, size = 0x2000, scoped, tag = 'input window, operand 0']
    #allocation3 [shape = 's32[2]{0}', space=sflag, size = 0x8, scoped, tag = 'scoped memory for tpu_custom_call.1']
    #allocation4 [shape = 's32[2]{0}', space=sflag, size = 0x8, scoped, tag = 'scoped memory for tpu_custom_call.1']
    #allocation5 [shape = 'u8[2048]{0}', space=vmem, size = 0x800, scoped, tag = 'input window, operand 1, single buffered']
    #allocation6 [shape = 's32[1]{0}', space=sflag, size = 0x4, scoped, tag = 'scoped memory for tpu_custom_call.1']
    #allocation7 [shape = 'u8[4096]{0}', space=vmem, size = 0x1000, scoped, tag = 'output window, operand 0']
    %7 = vsyncpa [#allocation3], 0
    %s8 = scalar_lea.sflag [#allocation3], 1
    %9 = vsyncpa %s8, 0
    %10 = vsyncpa [#allocation6], 0
    %11 = vsyncpa [#allocation4], 0
    %s12 = scalar_lea.sflag [#allocation4], 1
    %13 = vsyncpa %s12, 0
    loop: start=0, step=1, limit=4
    $region2: #{tpu_custom_call.1} parent=1 // loop_pre_header
      _
    $region3: #{tpu_custom_call.1} parent=1 // loop_header
      %s15 = sphi 0, %s19
      %p16 = scmp.ge.s32.totalorder %s15, 4
      %s25 = sphi 0, %s27
      %s28 = sphi 0, %s25
      %s29 = sphi 0, %s28
      %s45 = sphi 0, %s29
      %s49 = sphi 0, %s49
      %s51 = sphi 0, %s49
      %s52 = sphi 0, %s51
      %s66 = sphi 0, %s52
      %s72 = sphi 0, %s74
      %s75 = sphi 0, %s72
      %s76 = sphi 0, %s75
      %s92 = sphi 0, %s76
    $region4: #{tpu_custom_call.1} parent=1 // loop_header_branch
      %18 = sbr.rel (%p16) target = $region8
    $region5: #{tpu_custom_call.1} parent=1 // loop_body
      %s20 = ssub.s32 %s15, 1
      %s21 = ssub.s32 %s15, 2
      %s22 = sadd.s32 %s15, 1
      %s23 = ssub.s32 %s15, %s22
      %p24 = scmp.eq.s32.totalorder %s23, 0
      %s26 = sadd.s32 %s25, 1
      %s27 = scalar_select %p24, %s25, %s26
      %p30 = pneg %p24
      %p31 = scmp.eq.s32.totalorder %s15, 1
      %p32 = por %p30, %p31
      %p33 = scmp.ne.s32.totalorder %s25, %s28
      %p34 = scmp.eq.s32.totalorder %s15, 0
      %p35 = por %p33, %p34
      %p36 = scmp.ne.s32.totalorder %s25, %s28
      %p37 = scmp.eq.s32.totalorder %s20, 1
      %p38 = por %p36, %p37
      %p39 = scmp.ne.s32.totalorder %s28, %s29
      %p40 = scmp.eq.s32.totalorder %s20, 0
      %p41 = por %p39, %p40
      %p42 = scmp.ne.s32.totalorder %s28, %s29
      %p43 = scmp.eq.s32.totalorder %s21, 1
      %p44 = por %p42, %p43
      %p46 = scmp.ne.s32.totalorder %s29, %s45
      %p47 = scmp.eq.s32.totalorder %s21, 0
      %p48 = por %p46, %p47
      %s50 = sadd.s32 %s49, 1
      %p53 = scmp.eq.s32.totalorder %s15, 1
      %p54 = scmp.ne.s32.totalorder %s49, %s51
      %p55 = scmp.eq.s32.totalorder %s15, 0
      %p56 = por %p54, %p55
      %p57 = scmp.ne.s32.totalorder %s49, %s51
      %p58 = scmp.eq.s32.totalorder %s20, 1
      %p59 = por %p57, %p58
      %p60 = scmp.ne.s32.totalorder %s51, %s52
      %p61 = scmp.eq.s32.totalorder %s20, 0
      %p62 = por %p60, %p61
      %p63 = scmp.ne.s32.totalorder %s51, %s52
      %p64 = scmp.eq.s32.totalorder %s21, 1
      %p65 = por %p63, %p64
      %p67 = scmp.ne.s32.totalorder %s52, %s66
      %p68 = scmp.eq.s32.totalorder %s21, 0
      %p69 = por %p67, %p68
      %s70 = ssub.s32 %s15, %s22
      %p71 = scmp.eq.s32.totalorder %s70, 0
      %s73 = sadd.s32 %s72, 1
      %s74 = scalar_select %p71, %s72, %s73
      %p77 = pneg %p71
      %p78 = scmp.eq.s32.totalorder %s15, 1
      %p79 = por %p77, %p78
      %p80 = scmp.ne.s32.totalorder %s72, %s75
      %p81 = scmp.eq.s32.totalorder %s15, 0
      %p82 = por %p80, %p81
      %p83 = scmp.ne.s32.totalorder %s72, %s75
      %p84 = scmp.eq.s32.totalorder %s20, 1
      %p85 = por %p83, %p84
      %p86 = scmp.ne.s32.totalorder %s75, %s76
      %p87 = scmp.eq.s32.totalorder %s20, 0
      %p88 = por %p86, %p87
      %p89 = scmp.ne.s32.totalorder %s75, %s76
      %p90 = scmp.eq.s32.totalorder %s21, 1
      %p91 = por %p89, %p90
      %p93 = scmp.ne.s32.totalorder %s76, %s92
      %p94 = scmp.eq.s32.totalorder %s21, 0
      %p95 = por %p93, %p94
      %p96 = scmp.le.s32.totalorder 1, %s15
      %p97 = scmp.lt.s32.totalorder %s15, 3
      %p98 = pnand %p96, %p97
      %p99 = pneg %p98
      // Predicated region
      $region9: #{tpu_custom_call.1} parent=5 // pred_check
        _
      $region10: #{tpu_custom_call.1} parent=5 // pred_check_branch
        %101 = sbr.rel (%p98) target = $region12
      $region11: #{tpu_custom_call.1} parent=5 // pred_region
        %s102 = ssub.s32 %s15, 1
        // Predicated region
        $region13: #{tpu_custom_call.1} parent=11 // pred_check
          %p103 = pneg %p62
        $region14: #{tpu_custom_call.1} parent=11 // pred_check_branch
          %105 = sbr.rel (%p103) target = $region16
        $region15: #{tpu_custom_call.1} parent=11 // pred_region
          %107 = vsyncadd [#allocation6], 0
          %s109 = sshll.u32 %s1, 4
          %s110 = int_to_ptr.hbm [resolvable:$true] %s109
          %s111 = sshll.u32 [#allocation5], 4
          %s112 = int_to_ptr.vmem [resolvable:$true] %s111
          %114 = dma.hbm_to_vmem [thread:$0]  %s110, 64, %s112, [#allocation6]
        $region16: #{tpu_custom_call.1} parent=11 // pred_fallthru
          _
      $region12: #{tpu_custom_call.1} parent=5 // pred_fallthru
        _
      %p115 = scmp.lt.s32.totalorder %s15, 2
      // Predicated region
      $region17: #{tpu_custom_call.1} parent=5 // pred_check
        %p116 = pneg %p115
      $region18: #{tpu_custom_call.1} parent=5 // pred_check_branch
        %118 = sbr.rel (%p116) target = $region20
      $region19: #{tpu_custom_call.1} parent=5 // pred_region
        // Predicated region
        $region21: #{tpu_custom_call.1} parent=19 // pred_check
          %p119 = pneg %p35
        $region22: #{tpu_custom_call.1} parent=19 // pred_check_branch
          %121 = sbr.rel (%p119) target = $region24
        $region23: #{tpu_custom_call.1} parent=19 // pred_region
          %s122 = sand.u32 %s25, 1
          %s123 = scalar_lea.sflag [#allocation3], %s122
          %s124 = sand.u32 %s25, 1
          %s125 = smul.addr %s124, 8
          %s126 = scalar_lea.vmem [#allocation2], %s125
          %128 = vsyncadd %s123, 0
          %s129 = smul.addr %s15, 8
          %s130 = scalar_lea.hbm %s0, %s129
          %s132 = sshll.u32 %s130, 4
          %s133 = int_to_ptr.hbm [resolvable:$true] %s132
          %s134 = sshll.u32 %s126, 4
          %s135 = int_to_ptr.vmem [resolvable:$true] %s134
          %137 = dma.hbm_to_vmem [thread:$0]  %s133, 128, %s135, %s123
        $region24: #{tpu_custom_call.1} parent=19 // pred_fallthru
          _
      $region20: #{tpu_custom_call.1} parent=5 // pred_fallthru
        _
      %p138 = scmp.le.s32.totalorder 1, %s15
      %p139 = scmp.lt.s32.totalorder %s15, 3
      %p140 = pnand %p138, %p139
      %p141 = pneg %p140
      // Predicated region
      $region25: #{tpu_custom_call.1} parent=5 // pred_check
        _
      $region26: #{tpu_custom_call.1} parent=5 // pred_check_branch
        %143 = sbr.rel (%p140) target = $region28
      $region27: #{tpu_custom_call.1} parent=5 // pred_region
        %s144 = ssub.s32 %s15, 1
        %s145 = sand.u32 %s28, 1
        %s146 = scalar_lea.sflag [#allocation3], %s145
        %s147 = sand.u32 %s28, 1
        %s148 = smul.addr %s147, 8
        %s149 = scalar_lea.vmem [#allocation2], %s148
        // Predicated region
        $region29: #{tpu_custom_call.1} parent=27 // pred_check
          %p150 = pneg %p41
        $region30: #{tpu_custom_call.1} parent=27 // pred_check_branch
          %152 = sbr.rel (%p150) target = $region32
        $region31: #{tpu_custom_call.1} parent=27 // pred_region
          %154 = dma.done %s146, 128
        $region32: #{tpu_custom_call.1} parent=27 // pred_fallthru
          _
        // Predicated region
        $region33: #{tpu_custom_call.1} parent=27 // pred_check
          %p155 = pneg %p62
        $region34: #{tpu_custom_call.1} parent=27 // pred_check_branch
          %157 = sbr.rel (%p155) target = $region36
        $region35: #{tpu_custom_call.1} parent=27 // pred_region
          %159 = dma.done [#allocation6], 64
        $region36: #{tpu_custom_call.1} parent=27 // pred_fallthru
          _
        %s160 = sand.u32 %s28, 1
        %s161 = scalar_lea.sflag [#allocation3], %s160
        %s162 = sand.u32 %s28, 1
        %s163 = smul.addr %s162, 8
        %s164 = scalar_lea.vmem [#allocation2], %s163
        %p165 = pneg %p41
        %p166 = pneg %p38
        %p167 = pneg %p62
        %p168 = pneg %p59
        %p169 = pneg %p88
        %p170 = pneg %p85
        %s171 = sand.u32 %s75, 1
        %s172 = scalar_lea.sflag [#allocation4], %s171
        %s173 = sand.u32 %s75, 1
        %s174 = smul.addr %s173, 4
        %s175 = scalar_lea.vmem [#allocation7], %s174
        %v176 = vld [vmem:[#allocation5] sm:$0xf]
        %v177 = vld [vmem:[%s149] sm:$0xff]
        %vm178 = vcmask 64512
        %v180 = vsel %vm178, %v176, 0
        %182 = vmatpush.msra.mxu0 0.0
        %183 = vmatpush.msra.mxu0 0.0
        %184 = vmatpush.msra.mxu0 0.0
        %185 = vmatpush.msra.mxu0 0.0
        %186 = vmatpush.msra.mxu0 0.0
        %187 = vmatpush.msra.mxu0 0.0
        %188 = vmatpush.msra.mxu0 0.0
        %189 = vmatpush.msra.mxu0 0.0
        %190 = vmatpush.msra.mxu0 0.0
        %191 = vmatpush.msra.mxu0 0.0
        %192 = vmatpush.msra.mxu0 0.0
        %193 = vmatpush.msra.mxu0 0.0
        %194 = vmatpush.msra.mxu0 0.0
        %195 = vmatpush.msra.mxu0 0.0
        %196 = vmatpush.msra.mxu0 0.0
        %197 = vmatpush.msra.mxu0 %v177
        %198 = vmatmul.f32.gmra.mxu0 %v180
        %v199 = vpop.f32.mrf.mxu0
        %v200 = vadd.f32 0.0, %v199
        %201 = vdwg.mxu0
        %vm202 = vcmask 519168
        %203 = vst.msk [vmem:[%s175] sm:$0xf] %vm202, %v200
        %s204 = sand.u32 %s75, 1
        %s205 = scalar_lea.sflag [#allocation4], %s204
        %s206 = sand.u32 %s75, 1
        %s207 = smul.addr %s206, 4
        %s208 = scalar_lea.vmem [#allocation7], %s207
        // Predicated region
        $region37: #{tpu_custom_call.1} parent=27 // pred_check
          %p209 = pneg %p85
        $region38: #{tpu_custom_call.1} parent=27 // pred_check_branch
          %211 = sbr.rel (%p209) target = $region40
        $region39: #{tpu_custom_call.1} parent=27 // pred_region
          %213 = vsyncadd %s205, 0
          %s214 = smul.addr %s20, 4
          %s215 = scalar_lea.hbm %s2, %s214
          %s217 = sshll.u32 %s208, 4
          %s218 = int_to_ptr.vmem [resolvable:$true] %s217
          %s219 = sshll.u32 %s215, 4
          %s220 = int_to_ptr.hbm [resolvable:$true] %s219
          %222 = dma.vmem_to_hbm [thread:$0]  %s218, 64, %s220, %s205
        $region40: #{tpu_custom_call.1} parent=27 // pred_fallthru
          _
      $region28: #{tpu_custom_call.1} parent=5 // pred_fallthru
        _
      %p223 = scmp.le.s32.totalorder 2, %s15
      // Predicated region
      $region41: #{tpu_custom_call.1} parent=5 // pred_check
        %p224 = pneg %p223
      $region42: #{tpu_custom_call.1} parent=5 // pred_check_branch
        %226 = sbr.rel (%p224) target = $region44
      $region43: #{tpu_custom_call.1} parent=5 // pred_region
        %s227 = ssub.s32 %s15, 2
        // Predicated region
        $region45: #{tpu_custom_call.1} parent=43 // pred_check
          %p228 = pneg %p91
        $region46: #{tpu_custom_call.1} parent=43 // pred_check_branch
          %230 = sbr.rel (%p228) target = $region48
        $region47: #{tpu_custom_call.1} parent=43 // pred_region
          %s231 = sand.u32 %s76, 1
          %s232 = scalar_lea.sflag [#allocation4], %s231
          %s233 = sand.u32 %s76, 1
          %s234 = smul.addr %s233, 4
          %s235 = scalar_lea.vmem [#allocation7], %s234
          %237 = dma.done %s232, 64
        $region48: #{tpu_custom_call.1} parent=43 // pred_fallthru
          _
      $region44: #{tpu_custom_call.1} parent=5 // pred_fallthru
        _
    $region6: #{tpu_custom_call.1} parent=1 // loop_footer
      %s19 = sadd.s32 1, %s15
    $region7: #{tpu_custom_call.1} parent=1 // loop_footer_branch
      %14 = sbr.rel target = $region3
    $region8: #{tpu_custom_call.1} parent=1 // loop_exit
      _
    %238 = vsyncpa [#allocation3], 1
    %s239 = scalar_lea.sflag [#allocation3], 1
    %240 = vsyncpa %s239, 1
    %241 = vsyncpa [#allocation6], 1
    %242 = vsyncpa [#allocation4], 1
    %s243 = scalar_lea.sflag [#allocation4], 1
    %244 = vsyncpa %s243, 1

</llo_original>
